<compile_context>
chip_gen: v6e
topology: v6e:2x2x1
jax: 0.10.0
libtpu: 0.0.40
codegen_flags: <defaults>
</compile_context>

<pallas_src>
import functools

import jax
import jax.numpy as jnp
from jax.experimental import pallas as pl
from jax.experimental.pallas import tpu as pltpu

NDF = 64
EPS = 1e-5
SLOPE = 0.2


def _leaky(x):
    return jnp.where(x > 0, x, SLOPE * x)


def _stats_kernel(x_ref, w1_ref, b1_ref, w2_ref, sum_ref, ssq_ref, *, compute_dtype):
    """Pass 1: per-tile partial sum / sum-of-squares of pre-BN activations h2.

    x: (Cin, tm)  w1: (ndf, Cin)  b1: (ndf, 1)  w2: (2ndf, ndf)   (compute_dtype)
    sum/ssq blocks: (2ndf, 1) f32 per (batch, tile) grid point.
    """
    x = x_ref[...].astype(compute_dtype)
    # conv1 on the MXU (K=Cin is tiny but the MXU is otherwise idle); bias + leaky
    # on the VPU in compute_dtype.
    h1 = _leaky(jnp.dot(w1_ref[...], x, preferred_element_type=compute_dtype)
                + b1_ref[...])                                   # (ndf, tm)
    # conv2: f32 accumulation AND f32 result -> f32 batch statistics.
    h2 = jnp.dot(w2_ref[...], h1, preferred_element_type=jnp.float32)  # (2ndf, tm)
    # Partial reductions over the lane (pixel) axis. The (2ndf, 1) sublane-oriented
    # store is only 2*128 floats per tile -> negligible vs the tm-wide pass-2 output.
    sum_ref[...] = jnp.sum(h2, axis=1, keepdims=True)
    ssq_ref[...] = jnp.sum(h2 * h2, axis=1, keepdims=True)


def _apply_kernel(x_ref, w1_ref, b1_ref, w2s_ref, shift_ref, w3_ref, o_ref,
                  *, compute_dtype):
    """Pass 2: recompute conv1/conv2 (BN scale folded into W2), +shift, LeakyReLU,
    conv3 -> lane-dense (1, tm) output row."""
    x = x_ref[...].astype(compute_dtype)
    h1 = _leaky(jnp.dot(w1_ref[...], x, preferred_element_type=compute_dtype)
                + b1_ref[...])                                   # (ndf, tm)
    # conv2 with gamma*rsqrt(var+eps) folded into the rows of W2. MXU accumulates
    # in f32 internally; popping directly in compute_dtype keeps the following
    # element-wise work (and the conv3 operand) in bf16 on v6e/v7x.
    h2 = jnp.dot(w2s_ref[...], h1, preferred_element_type=compute_dtype)  # (2ndf, tm)
    h2n = _leaky(h2 + shift_ref[...])        # folded BatchNorm: just shift + leaky
    # conv3: contract the channel (sublane) axis -> lane-dense (1, tm) f32 output.
    o_ref[...] = jnp.dot(w3_ref[...], h2n, preferred_element_type=jnp.float32)


def pixel_discriminator(x_nchw, params, *, tm=8192, compute_dtype=jnp.bfloat16):
    """Forward pass. x_nchw: (N, Cin, H, W) float32 -> (N, 1, H, W) float32."""
    n, c, h, w = x_nchw.shape
    hw = h * w
    m = n * hw
    w1, b1, w2, gamma, beta, w3 = params
    two_ndf = w2.shape[0]

    # FREE view: NCHW -> (N, Cin, H*W); trailing-dim merge, no data movement.
    x_ncm = x_nchw.reshape(n, c, hw)

    # Pixel-tile size: lane aligned, at most the (lane-aligned) per-image pixel count.
    hw_al = pl.cdiv(hw, 128) * 128
    tm = max(128, (int(tm) // 128) * 128)
    tm = min(tm, hw_al)
    hw_pad = pl.cdiv(hw, tm) * tm
    num_tiles = hw_pad // tm
    if hw_pad != hw:        # only pad when the spatial extent is not lane-aligned
        x_ncm = jnp.pad(x_ncm, ((0, 0), (0, 0), (0, hw_pad - hw)))

    # Weights cast once (tiny). Conv matmul operands are compute_dtype.
    w1_c = w1.astype(compute_dtype)
    b1_c = b1.astype(compute_dtype)
    w2_c = w2.astype(compute_dtype)

    grid = (n, num_tiles)
    parallel = pltpu.CompilerParams(dimension_semantics=("parallel", "parallel"))

    # Small params: full-array blocks, constant index_map -> DMA'd once, resident.
    def const(shape):
        return pl.BlockSpec(shape, lambda b, i: (0,) * len(shape))

    x_spec = pl.BlockSpec((None, c, tm), lambda b, i: (b, 0, i))

    # ---- Pass 1: per-(batch, tile) partial sums of h2 and h2^2.
    psum, pssq = pl.pallas_call(
        functools.partial(_stats_kernel, compute_dtype=compute_dtype),
        grid=grid,
        in_specs=[x_spec, const(w1_c.shape), const(b1_c.shape), const(w2_c.shape)],
        out_specs=[pl.BlockSpec((None, None, two_ndf, 1),
                                lambda b, i: (b, i, 0, 0))] * 2,
        out_shape=[jax.ShapeDtypeStruct((n, num_tiles, two_ndf, 1), jnp.float32)] * 2,
        compiler_params=parallel,
    )(x_ncm, w1_c, b1_c, w2_c)

    # ---- Reduce partials + fold BatchNorm (training-mode batch stats, biased var)
    #      into one per-channel scale/shift (tiny f32 wrapper math).
    s = jnp.sum(psum, axis=(0, 1))                                  # (2ndf, 1)
    q = jnp.sum(pssq, axis=(0, 1))
    n_pad_pixels = n * (hw_pad - hw)
    if n_pad_pixels:
        # Padded pixels have x == 0 -> h1 = leaky(b1) -> constant h2 column
        # c = w2 @ leaky(b1). Subtract their contribution analytically instead of
        # masking per pixel inside the kernel.
        h1_pad = _leaky(b1.astype(compute_dtype)).astype(compute_dtype)
        c_pad = jnp.dot(w2.astype(compute_dtype), h1_pad,
                        preferred_element_type=jnp.float32,
                        precision=jax.lax.Precision.HIGHEST)        # (2ndf, 1)
        s = s - n_pad_pixels * c_pad
        q = q - n_pad_pixels * c_pad * c_pad
    mean = s / m
    var = jnp.maximum(q / m - mean * mean, 0.0)
    scale = gamma * jax.lax.rsqrt(var + EPS)                        # (2ndf, 1) f32
    shift = beta - mean * scale

    # Fold the BN scale into W2's rows (per-output-channel) so pass 2 only shifts.
    w2s_c = (w2 * scale).astype(compute_dtype)
    shift_c = shift.astype(compute_dtype)
    w3_c = w3.astype(compute_dtype)

    # ---- Pass 2: normalize + LeakyReLU + conv3 -> lane-dense (1, tm) rows.
    out_n1m = pl.pallas_call(
        functools.partial(_apply_kernel, compute_dtype=compute_dtype),
        grid=grid,
        in_specs=[x_spec, const(w1_c.shape), const(b1_c.shape), const(w2s_c.shape),
                  const(shift_c.shape), const(w3_c.shape)],
        out_specs=pl.BlockSpec((None, 1, tm), lambda b, i: (b, 0, i)),
        out_shape=jax.ShapeDtypeStruct((n, 1, hw_pad), jnp.float32),
        compiler_params=parallel,
    )(x_ncm, w1_c, b1_c, w2s_c, shift_c, w3_c)

    # (N, 1, hw_pad) -> (N, 1, H, W); the slice is a no-op when no padding was added.
    return out_n1m[:, :, :hw].reshape(n, 1, h, w)


def init_params(key, input_nc, ndf=NDF):
    """Weights in (Cout, Cin) layout (== PyTorch Conv2d 1x1 weight squeezed);
    biases / BN parameters as (C, 1) columns (channels on the sublane axis)."""
    k1, k2, k3, k4, k5, k6 = jax.random.split(key, 6)
    w1 = 0.1 * jax.random.normal(k1, (ndf, input_nc), jnp.float32)
    b1 = 0.1 * jax.random.normal(k2, (ndf, 1), jnp.float32)
    w2 = 0.1 * jax.random.normal(k3, (2 * ndf, ndf), jnp.float32)
    gamma = 1.0 + 0.1 * jax.random.normal(k4, (2 * ndf, 1), jnp.float32)
    beta = 0.1 * jax.random.normal(k5, (2 * ndf, 1), jnp.float32)
    w3 = 0.1 * jax.random.normal(k6, (1, 2 * ndf), jnp.float32)
    return (w1, b1, w2, gamma, beta, w3)


def _reference(x_nchw, params, compute_dtype=jnp.float32):
    """Pure-JAX reference (PyTorch training-mode semantics when compute_dtype=f32;
    for bf16, matmul operands are cast like the kernel but BN stays on f32 h2)."""
    n, c, h, w = x_nchw.shape
    x = jnp.transpose(x_nchw, (1, 0, 2, 3)).reshape(c, n * h * w)
    w1, b1, w2, gamma, beta, w3 = params
    hi = jax.lax.Precision.HIGHEST
    cd = compute_dtype
    h1 = _leaky(jnp.dot(w1.astype(cd), x.astype(cd),
                        preferred_element_type=jnp.float32, precision=hi) + b1)
    h2 = jnp.dot(w2.astype(cd), h1.astype(cd),
                 preferred_element_type=jnp.float32, precision=hi)
    mean = jnp.mean(h2, axis=1, keepdims=True)
    var = jnp.var(h2, axis=1, keepdims=True)              # biased (training mode)
    h2n = _leaky((h2 - mean) * jax.lax.rsqrt(var + EPS) * gamma + beta)
    o = jnp.dot(w3.astype(cd), h2n.astype(cd),
                preferred_element_type=jnp.float32, precision=hi)
    return jnp.transpose(o.reshape(1, n, h, w), (1, 0, 2, 3))


if __name__ == "__main__":
    key = jax.random.PRNGKey(0)
    kx, kp = jax.random.split(key)

    N, CIN, H, W = 2, 4, 16, 16
    x = jax.random.normal(kx, (N, CIN, H, W), jnp.float32)
    params = init_params(kp, CIN)

    # f32 path: matches the PyTorch (f32) forward pass.
    out = jax.block_until_ready(
        pixel_discriminator(x, params, compute_dtype=jnp.float32))
    ref = _reference(x, params, compute_dtype=jnp.float32)
    assert out.shape == (N, 1, H, W), out.shape
    assert jnp.allclose(out, ref, atol=1e-3, rtol=1e-3), \
        f"f32 mismatch, max err {float(jnp.max(jnp.abs(out - ref)))}"

    # bf16-MXU path (perf default for v6e/v7x): bf16 matmul operands + bf16
    # element-wise, f32 accumulation for batch statistics. Slightly looser
    # tolerance: BN scale folded into bf16 W2 and bf16 h1/h2 storage add rounding
    # relative to the f32-BN reference.
    out_bf16 = jax.block_until_ready(
        pixel_discriminator(x, params, compute_dtype=jnp.bfloat16))
    ref_bf16 = _reference(x, params, compute_dtype=jnp.bfloat16)
    assert jnp.allclose(out_bf16, ref_bf16, atol=2e-2, rtol=2e-2), \
        f"bf16 mismatch, max err {float(jnp.max(jnp.abs(out_bf16 - ref_bf16)))}"

    print("KERNEL_OK")
</pallas_src>

<mosaic_0001>
module attributes {stable_mosaic.version = 11 : i64} {
  func.func @_stats_kernel(%arg0: i32, %arg1: i32, %arg2: memref<1x4x256xf32, #tpu.memory_space<vmem>>, %arg3: memref<64x4xf32, #tpu.memory_space<vmem>>, %arg4: memref<64x1xf32, #tpu.memory_space<vmem>>, %arg5: memref<128x64xf32, #tpu.memory_space<vmem>>, %arg6: memref<1x1x128x1xf32, #tpu.memory_space<vmem>>, %arg7: memref<1x1x128x1xf32, #tpu.memory_space<vmem>>) attributes {dimension_semantics = [#tpu.dimension_semantics<parallel>, #tpu.dimension_semantics<parallel>], iteration_bounds = array<i64: 2, 1>, scalar_prefetch = 0 : i64, scratch_operands = 0 : i64, tpu.core_type = #tpu.core_type<tc>, window_params = [{transform_indices = @transform_0, window_bounds = array<i64: 1, 4, 256>}, {pipeline_mode = #tpu.pipeline_mode<synchronous>, transform_indices = @transform_1, window_bounds = array<i64: 64, 4>}, {pipeline_mode = #tpu.pipeline_mode<synchronous>, transform_indices = @transform_2, window_bounds = array<i64: 64, 1>}, {pipeline_mode = #tpu.pipeline_mode<synchronous>, transform_indices = @transform_3, window_bounds = array<i64: 128, 64>}, {transform_indices = @transform_4, window_bounds = array<i64: 1, 1, 128, 1>}, {transform_indices = @transform_5, window_bounds = array<i64: 1, 1, 128, 1>}]} {
    %c0 = arith.constant 0 : index
    %c0_0 = arith.constant 0 : index
    %c0_1 = arith.constant 0 : index
    %0 = vector.load %arg2[%c0, %c0_0, %c0_1] : memref<1x4x256xf32, #tpu.memory_space<vmem>>, vector<1x4x256xf32>
    %1 = vector.shape_cast %0 : vector<1x4x256xf32> to vector<4x256xf32>
    %c0_2 = arith.constant 0 : index
    %c0_3 = arith.constant 0 : index
    %2 = vector.load %arg3[%c0_2, %c0_3] : memref<64x4xf32, #tpu.memory_space<vmem>>, vector<64x4xf32>
    %cst = arith.constant dense<0.000000e+00> : vector<64x256xf32>
    %3 = tpu.matmul %2, %1, %cst {dimension_numbers = #tpu.dot_dimension_numbers<[1], [0], [0], [1], [0, 0, 1, 1], [], []>} : vector<64x4xf32>, vector<4x256xf32>, vector<64x256xf32> -> vector<64x256xf32>
    %c0_4 = arith.constant 0 : index
    %c0_5 = arith.constant 0 : index
    %4 = vector.load %arg4[%c0_4, %c0_5] : memref<64x1xf32, #tpu.memory_space<vmem>>, vector<64x1xf32>
    %5 = vector.broadcast %4 : vector<64x1xf32> to vector<64x256xf32>
    %6 = arith.addf %3, %5 : vector<64x256xf32>
    %cst_6 = arith.constant 0.000000e+00 : f32
    %7 = vector.broadcast %cst_6 : f32 to vector<64x256xf32>
    %8 = arith.cmpf ogt, %6, %7 : vector<64x256xf32>
    %cst_7 = arith.constant 2.000000e-01 : f32
    %9 = vector.broadcast %cst_7 : f32 to vector<64x256xf32>
    %10 = arith.mulf %9, %6 : vector<64x256xf32>
    %11 = arith.select %8, %6, %10 : vector<64x256xi1>, vector<64x256xf32>
    %c0_8 = arith.constant 0 : index
    %c0_9 = arith.constant 0 : index
    %12 = vector.load %arg5[%c0_8, %c0_9] : memref<128x64xf32, #tpu.memory_space<vmem>>, vector<128x64xf32>
    %cst_10 = arith.constant dense<0.000000e+00> : vector<128x256xf32>
    %13 = tpu.matmul %12, %11, %cst_10 {dimension_numbers = #tpu.dot_dimension_numbers<[1], [0], [0], [1], [0, 0, 1, 1], [], []>} : vector<128x64xf32>, vector<64x256xf32>, vector<128x256xf32> -> vector<128x256xf32>
    %cst_11 = arith.constant dense<0.000000e+00> : vector<128xf32>
    %14 = vector.multi_reduction <add>, %13, %cst_11 [1] : vector<128x256xf32> to vector<128xf32>
    %15 = vector.shape_cast %14 : vector<128xf32> to vector<128x1xf32>
    %c0_12 = arith.constant 0 : index
    %c0_13 = arith.constant 0 : index
    %c0_14 = arith.constant 0 : index
    %c0_15 = arith.constant 0 : index
    %16 = vector.load %arg6[%c0_12, %c0_13, %c0_14, %c0_15] : memref<1x1x128x1xf32, #tpu.memory_space<vmem>>, vector<1x1x128x1xf32>
    %17 = vector.shape_cast %16 : vector<1x1x128x1xf32> to vector<128x1xf32>
    %18 = vector.shape_cast %15 : vector<128x1xf32> to vector<1x1x128x1xf32>
    tpu.vector_store %arg6[%c0_12, %c0_13, %c0_14, %c0_15], %18 {strides = array<i32>} : memref<1x1x128x1xf32, #tpu.memory_space<vmem>>, vector<1x1x128x1xf32>,
    %19 = arith.mulf %13, %13 : vector<128x256xf32>
    %cst_16 = arith.constant dense<0.000000e+00> : vector<128xf32>
    %20 = vector.multi_reduction <add>, %19, %cst_16 [1] : vector<128x256xf32> to vector<128xf32>
    %21 = vector.shape_cast %20 : vector<128xf32> to vector<128x1xf32>
    %c0_17 = arith.constant 0 : index
    %c0_18 = arith.constant 0 : index
    %c0_19 = arith.constant 0 : index
    %c0_20 = arith.constant 0 : index
    %22 = vector.load %arg7[%c0_17, %c0_18, %c0_19, %c0_20] : memref<1x1x128x1xf32, #tpu.memory_space<vmem>>, vector<1x1x128x1xf32>
    %23 = vector.shape_cast %22 : vector<1x1x128x1xf32> to vector<128x1xf32>
    %24 = vector.shape_cast %21 : vector<128x1xf32> to vector<1x1x128x1xf32>
    tpu.vector_store %arg7[%c0_17, %c0_18, %c0_19, %c0_20], %24 {strides = array<i32>} : memref<1x1x128x1xf32, #tpu.memory_space<vmem>>, vector<1x1x128x1xf32>,
    return
  }
  func.func @transform_0(%arg0: i32, %arg1: i32) -> (i32, i32, i32) {
    %c0_i32 = arith.constant 0 : i32
    %c0_i32_0 = arith.constant 0 : i32
    return %arg0, %c0_i32, %arg1 : i32, i32, i32
  }
  func.func @transform_1(%arg0: i32, %arg1: i32) -> (i32, i32) {
    %c0_i32 = arith.constant 0 : i32
    %c0_i32_0 = arith.constant 0 : i32
    %c0_i32_1 = arith.constant 0 : i32
    return %c0_i32, %c0_i32_0 : i32, i32
  }
  func.func @transform_2(%arg0: i32, %arg1: i32) -> (i32, i32) {
    %c0_i32 = arith.constant 0 : i32
    %c0_i32_0 = arith.constant 0 : i32
    %c0_i32_1 = arith.constant 0 : i32
    return %c0_i32, %c0_i32_0 : i32, i32
  }
  func.func @transform_3(%arg0: i32, %arg1: i32) -> (i32, i32) {
    %c0_i32 = arith.constant 0 : i32
    %c0_i32_0 = arith.constant 0 : i32
    %c0_i32_1 = arith.constant 0 : i32
    return %c0_i32, %c0_i32_0 : i32, i32
  }
  func.func @transform_4(%arg0: i32, %arg1: i32) -> (i32, i32, i32, i32) {
    %c0_i32 = arith.constant 0 : i32
    %c0_i32_0 = arith.constant 0 : i32
    %c0_i32_1 = arith.constant 0 : i32
    return %arg0, %arg1, %c0_i32, %c0_i32_0 : i32, i32, i32, i32
  }
  func.func @transform_5(%arg0: i32, %arg1: i32) -> (i32, i32, i32, i32) {
    %c0_i32 = arith.constant 0 : i32
    %c0_i32_0 = arith.constant 0 : i32
    %c0_i32_1 = arith.constant 0 : i32
    return %arg0, %arg1, %c0_i32, %c0_i32_0 : i32, i32, i32, i32
  }
}

</mosaic_0001>

<llo_original>
// kernel: tpu_custom_call.1
$region0: #{tpu_custom_call.1}
  #allocation0 [shape = 'u32[]', space=smem, size = 0x4, offset = 0x4, fixed_abs, tag = 'smem constant byte address 0x4 - core index']
  #allocation1 [shape = 'u32[144,128]{1,0:T(1,128)}', space=vmem, size = 0x12000, scoped, tag = 'internal scratch']
  %s0 = inlined_call_operand.vmem [shape: f32[2,4,256], index: 0, kind: input, shape index: {}]
  %s1 = inlined_call_operand.vmem [shape: f32[64,4], index: 1, kind: input, shape index: {}]
  %s2 = inlined_call_operand.vmem [shape: f32[64,1], index: 2, kind: input, shape index: {}]
  %s3 = inlined_call_operand.vmem [shape: f32[128,64], index: 3, kind: input, shape index: {}]
  %s4 = inlined_call_operand.vmem [shape: f32[2,1,128,1], index: 4, kind: output, shape index: {0}]
  %s5 = inlined_call_operand.vmem [shape: f32[2,1,128,1], index: 5, kind: output, shape index: {1}]
  %6 = xla_tuple %s4, %s5
  %s7 = sld [smem:[#allocation0]]
  $region57: #{tpu_custom_call.1} parent=0
    _
  %s9 = ssub.s32 1, %s7
  %s10 = scalar_select 0, %s9, %s7
  loop: start=0, step=1, limit=4
  $region2: #{tpu_custom_call.1} parent=0 // loop_pre_header
    _
  $region3: #{tpu_custom_call.1} parent=0 // loop_header
    %s12 = sphi 0, %s16
    %p13 = scmp.ge.s32.totalorder %s12, 4
    %s19 = sphi 0, %s31
    %s20 = sphi 0, %s27
    %s21 = sphi 0, %s19
    %s22 = sphi 0, %s20
    %s23 = sphi 0, %s21
    %s24 = sphi 0, %s22
    %s36 = sphi 0, %s38
    %s39 = sphi 0, %s36
    %s40 = sphi 0, %s39
    %s56 = sphi 0, %s40
    %s60 = sphi 0, %s60
    %s62 = sphi 0, %s60
    %s63 = sphi 0, %s62
    %s77 = sphi 0, %s63
    %s81 = sphi 0, %s81
    %s83 = sphi 0, %s81
    %s84 = sphi 0, %s83
    %s98 = sphi 0, %s84
    %s102 = sphi 0, %s102
    %s104 = sphi 0, %s102
    %s105 = sphi 0, %s104
    %s119 = sphi 0, %s105
    %s127 = sphi 0, %s129
    %s130 = sphi 0, %s127
    %s131 = sphi 0, %s130
    %s147 = sphi 0, %s131
    %s155 = sphi 0, %s157
    %s158 = sphi 0, %s155
    %s159 = sphi 0, %s158
    %s175 = sphi 0, %s159
  $region4: #{tpu_custom_call.1} parent=0 // loop_header_branch
    %15 = sbr.rel (%p13) target = $region8
  $region5: #{tpu_custom_call.1} parent=0 // loop_body
    %s17 = ssub.s32 %s12, 1
    %s18 = ssub.s32 %s12, 2
    %s25 = sadd.s32 1, %s20
    %p26 = scmp.ge.s32.totalorder %s25, 1
    %s27 = scalar_select %p26, 0, %s25
    %s28 = sadd.s32 1, %s19
    %s29 = scalar_select %p26, %s28, %s19
    %p30 = scmp.ge.s32.totalorder %s29, 2
    %s31 = scalar_select %p30, 0, %s29
    %s32 = ssub.s32 %s19, %s31
    %s33 = ssub.s32 %s20, %s27
    %s34 = sor.u32 %s32, %s33
    %p35 = scmp.eq.s32.totalorder %s34, 0
    %s37 = sadd.s32 %s36, 1
    %s38 = scalar_select %p35, %s36, %s37
    %p41 = pneg %p35
    %p42 = scmp.eq.s32.totalorder %s12, 1
    %p43 = por %p41, %p42
    %p44 = scmp.ne.s32.totalorder %s36, %s39
    %p45 = scmp.eq.s32.totalorder %s12, 0
    %p46 = por %p44, %p45
    %p47 = scmp.ne.s32.totalorder %s36, %s39
    %p48 = scmp.eq.s32.totalorder %s17, 1
    %p49 = por %p47, %p48
    %p50 = scmp.ne.s32.totalorder %s39, %s40
    %p51 = scmp.eq.s32.totalorder %s17, 0
    %p52 = por %p50, %p51
    %p53 = scmp.ne.s32.totalorder %s39, %s40
    %p54 = scmp.eq.s32.totalorder %s18, 1
    %p55 = por %p53, %p54
    %p57 = scmp.ne.s32.totalorder %s40, %s56
    %p58 = scmp.eq.s32.totalorder %s18, 0
    %p59 = por %p57, %p58
    %s61 = sadd.s32 %s60, 1
    %p64 = scmp.eq.s32.totalorder %s12, 1
    %p65 = scmp.ne.s32.totalorder %s60, %s62
    %p66 = scmp.eq.s32.totalorder %s12, 0
    %p67 = por %p65, %p66
    %p68 = scmp.ne.s32.totalorder %s60, %s62
    %p69 = scmp.eq.s32.totalorder %s17, 1
    %p70 = por %p68, %p69
    %p71 = scmp.ne.s32.totalorder %s62, %s63
    %p72 = scmp.eq.s32.totalorder %s17, 0
    %p73 = por %p71, %p72
    %p74 = scmp.ne.s32.totalorder %s62, %s63
    %p75 = scmp.eq.s32.totalorder %s18, 1
    %p76 = por %p74, %p75
    %p78 = scmp.ne.s32.totalorder %s63, %s77
    %p79 = scmp.eq.s32.totalorder %s18, 0
    %p80 = por %p78, %p79
    %s82 = sadd.s32 %s81, 1
    %p85 = scmp.eq.s32.totalorder %s12, 1
    %p86 = scmp.ne.s32.totalorder %s81, %s83
    %p87 = scmp.eq.s32.totalorder %s12, 0
    %p88 = por %p86, %p87
    %p89 = scmp.ne.s32.totalorder %s81, %s83
    %p90 = scmp.eq.s32.totalorder %s17, 1
    %p91 = por %p89, %p90
    %p92 = scmp.ne.s32.totalorder %s83, %s84
    %p93 = scmp.eq.s32.totalorder %s17, 0
    %p94 = por %p92, %p93
    %p95 = scmp.ne.s32.totalorder %s83, %s84
    %p96 = scmp.eq.s32.totalorder %s18, 1
    %p97 = por %p95, %p96
    %p99 = scmp.ne.s32.totalorder %s84, %s98
    %p100 = scmp.eq.s32.totalorder %s18, 0
    %p101 = por %p99, %p100
    %s103 = sadd.s32 %s102, 1
    %p106 = scmp.eq.s32.totalorder %s12, 1
    %p107 = scmp.ne.s32.totalorder %s102, %s104
    %p108 = scmp.eq.s32.totalorder %s12, 0
    %p109 = por %p107, %p108
    %p110 = scmp.ne.s32.totalorder %s102, %s104
    %p111 = scmp.eq.s32.totalorder %s17, 1
    %p112 = por %p110, %p111
    %p113 = scmp.ne.s32.totalorder %s104, %s105
    %p114 = scmp.eq.s32.totalorder %s17, 0
    %p115 = por %p113, %p114
    %p116 = scmp.ne.s32.totalorder %s104, %s105
    %p117 = scmp.eq.s32.totalorder %s18, 1
    %p118 = por %p116, %p117
    %p120 = scmp.ne.s32.totalorder %s105, %s119
    %p121 = scmp.eq.s32.totalorder %s18, 0
    %p122 = por %p120, %p121
    %s123 = ssub.s32 %s19, %s31
    %s124 = ssub.s32 %s20, %s27
    %s125 = sor.u32 %s123, %s124
    %p126 = scmp.eq.s32.totalorder %s125, 0
    %s128 = sadd.s32 %s127, 1
    %s129 = scalar_select %p126, %s127, %s128
    %p132 = pneg %p126
    %p133 = scmp.eq.s32.totalorder %s12, 1
    %p134 = por %p132, %p133
    %p135 = scmp.ne.s32.totalorder %s127, %s130
    %p136 = scmp.eq.s32.totalorder %s12, 0
    %p137 = por %p135, %p136
    %p138 = scmp.ne.s32.totalorder %s127, %s130
    %p139 = scmp.eq.s32.totalorder %s17, 1
    %p140 = por %p138, %p139
    %p141 = scmp.ne.s32.totalorder %s130, %s131
    %p142 = scmp.eq.s32.totalorder %s17, 0
    %p143 = por %p141, %p142
    %p144 = scmp.ne.s32.totalorder %s130, %s131
    %p145 = scmp.eq.s32.totalorder %s18, 1
    %p146 = por %p144, %p145
    %p148 = scmp.ne.s32.totalorder %s131, %s147
    %p149 = scmp.eq.s32.totalorder %s18, 0
    %p150 = por %p148, %p149
    %s151 = ssub.s32 %s19, %s31
    %s152 = ssub.s32 %s20, %s27
    %s153 = sor.u32 %s151, %s152
    %p154 = scmp.eq.s32.totalorder %s153, 0
    %s156 = sadd.s32 %s155, 1
    %s157 = scalar_select %p154, %s155, %s156
    %p160 = pneg %p154
    %p161 = scmp.eq.s32.totalorder %s12, 1
    %p162 = por %p160, %p161
    %p163 = scmp.ne.s32.totalorder %s155, %s158
    %p164 = scmp.eq.s32.totalorder %s12, 0
    %p165 = por %p163, %p164
    %p166 = scmp.ne.s32.totalorder %s155, %s158
    %p167 = scmp.eq.s32.totalorder %s17, 1
    %p168 = por %p166, %p167
    %p169 = scmp.ne.s32.totalorder %s158, %s159
    %p170 = scmp.eq.s32.totalorder %s17, 0
    %p171 = por %p169, %p170
    %p172 = scmp.ne.s32.totalorder %s158, %s159
    %p173 = scmp.eq.s32.totalorder %s18, 1
    %p174 = por %p172, %p173
    %p176 = scmp.ne.s32.totalorder %s159, %s175
    %p177 = scmp.eq.s32.totalorder %s18, 0
    %p178 = por %p176, %p177
    %p179 = scmp.le.s32.totalorder 1, %s12
    %p180 = scmp.lt.s32.totalorder %s12, 3
    %p181 = pnand %p179, %p180
    %p182 = pneg %p181
    // Predicated region
    $region9: #{tpu_custom_call.1} parent=5 // pred_check
      _
    $region10: #{tpu_custom_call.1} parent=5 // pred_check_branch
      %184 = sbr.rel (%p181) target = $region12
    $region11: #{tpu_custom_call.1} parent=5 // pred_region
      %s185 = ssub.s32 %s12, 1
      // Predicated region
      $region13: #{tpu_custom_call.1} parent=11 // pred_check
        %p186 = pneg %p73
      $region14: #{tpu_custom_call.1} parent=11 // pred_check_branch
        %188 = sbr.rel (%p186) target = $region16
      $region15: #{tpu_custom_call.1} parent=11 // pred_region
        _
      $region16: #{tpu_custom_call.1} parent=11 // pred_fallthru
        _
      // Predicated region
      $region17: #{tpu_custom_call.1} parent=11 // pred_check
        %p189 = pneg %p94
      $region18: #{tpu_custom_call.1} parent=11 // pred_check_branch
        %191 = sbr.rel (%p189) target = $region20
      $region19: #{tpu_custom_call.1} parent=11 // pred_region
        _
      $region20: #{tpu_custom_call.1} parent=11 // pred_fallthru
        _
      // Predicated region
      $region21: #{tpu_custom_call.1} parent=11 // pred_check
        %p192 = pneg %p115
      $region22: #{tpu_custom_call.1} parent=11 // pred_check_branch
        %194 = sbr.rel (%p192) target = $region24
      $region23: #{tpu_custom_call.1} parent=11 // pred_region
        _
      $region24: #{tpu_custom_call.1} parent=11 // pred_fallthru
        _
    $region12: #{tpu_custom_call.1} parent=5 // pred_fallthru
      _
    %p195 = scmp.lt.s32.totalorder %s12, 2
    // Predicated region
    $region25: #{tpu_custom_call.1} parent=5 // pred_check
      %p196 = pneg %p195
    $region26: #{tpu_custom_call.1} parent=5 // pred_check_branch
      %198 = sbr.rel (%p196) target = $region28
    $region27: #{tpu_custom_call.1} parent=5 // pred_region
      // Predicated region
      $region29: #{tpu_custom_call.1} parent=27 // pred_check
        %p199 = pneg %p46
      $region30: #{tpu_custom_call.1} parent=27 // pred_check_branch
        %201 = sbr.rel (%p199) target = $region32
      $region31: #{tpu_custom_call.1} parent=27 // pred_region
        %s202 = smul.u32 2, %s20
        %p203 = scmp.lt.s32.totalorder %s19, 1
        %s204 = scalar_select %p203, %s19, 1
        %p205 = scmp.lt.s32.totalorder %s202, 1
        %s206 = scalar_select %p205, %s202, 1
        %s207 = smul.addr %s204, 2
        %s208 = sadd.s32 %s206, %s207
        %s209 = smul.addr %s208, 4
        %s210 = scalar_lea.vmem %s0, %s209
        %s211 = smul.u32 2, %s20
      $region32: #{tpu_custom_call.1} parent=27 // pred_fallthru
        _
    $region28: #{tpu_custom_call.1} parent=5 // pred_fallthru
      _
    %p212 = scmp.le.s32.totalorder 1, %s12
    %p213 = scmp.lt.s32.totalorder %s12, 3
    %p214 = pnand %p212, %p213
    %p215 = pneg %p214
    // Predicated region
    $region33: #{tpu_custom_call.1} parent=5 // pred_check
      _
    $region34: #{tpu_custom_call.1} parent=5 // pred_check_branch
      %217 = sbr.rel (%p214) target = $region36
    $region35: #{tpu_custom_call.1} parent=5 // pred_region
      %s218 = ssub.s32 %s12, 1
      %s219 = smul.u32 2, %s22
      %p220 = scmp.lt.s32.totalorder %s21, 1
      %s221 = scalar_select %p220, %s21, 1
      %p222 = scmp.lt.s32.totalorder %s219, 1
      %s223 = scalar_select %p222, %s219, 1
      %s224 = smul.addr %s221, 2
      %s225 = sadd.s32 %s223, %s224
      %s226 = smul.addr %s225, 4
      %s227 = scalar_lea.vmem %s0, %s226
      %p228 = pneg %p52
      %p229 = pneg %p49
      %p230 = pneg %p73
      %p231 = pneg %p70
      %p232 = pneg %p94
      %p233 = pneg %p91
      %p234 = pneg %p115
      %p235 = pneg %p112
      %p236 = pneg %p143
      %p237 = pneg %p140
      %p238 = scmp.lt.s32.totalorder %s21, 1
      %s239 = scalar_select %p238, %s21, 1
      %p240 = scmp.lt.s32.totalorder %s22, 0
      %s241 = scalar_select %p240, %s22, 0
      %s242 = smul.addr %s241, 16
      %s243 = smul.addr %s239, 16
      %s244 = sadd.s32 %s242, %s243
      %s245 = smul.addr %s244, 8
      %s246 = scalar_lea.vmem %s4, %s245
      %p247 = pneg %p171
      %p248 = pneg %p168
      %p249 = scmp.lt.s32.totalorder %s21, 1
      %s250 = scalar_select %p249, %s21, 1
      %p251 = scmp.lt.s32.totalorder %s22, 0
      %s252 = scalar_select %p251, %s22, 0
      %s253 = smul.addr %s252, 16
      %s254 = smul.addr %s250, 16
      %s255 = sadd.s32 %s253, %s254
      %s256 = smul.addr %s255, 8
      %s257 = scalar_lea.vmem %s5, %s256
      %s258 = smul.u32 2, %s22
      %p259 = scmp.lt.s32.totalorder %s21, 1
      %s260 = scalar_select %p259, %s21, 1
      %p261 = scmp.lt.s32.totalorder %s258, 1
      %s262 = scalar_select %p261, %s258, 1
      %s263 = smul.addr %s260, 2
      %s264 = sadd.s32 %s262, %s263
      %s265 = smul.addr %s264, 4
      %s266 = scalar_lea.vmem %s0, %s265
      %s267 = smul.u32 2, %s22
      %p268 = scmp.lt.s32.totalorder %s21, 1
      %s269 = scalar_select %p268, %s21, 1
      %p270 = scmp.lt.s32.totalorder %s22, 0
      %s271 = scalar_select %p270, %s22, 0
      %s272 = smul.addr %s271, 16
      %s273 = smul.addr %s269, 16
      %s274 = sadd.s32 %s272, %s273
      %s275 = smul.addr %s274, 8
      %s276 = scalar_lea.vmem %s4, %s275
      %p277 = scmp.lt.s32.totalorder %s21, 1
      %s278 = scalar_select %p277, %s21, 1
      %p279 = scmp.lt.s32.totalorder %s22, 0
      %s280 = scalar_select %p279, %s22, 0
      %s281 = smul.addr %s280, 16
      %s282 = smul.addr %s278, 16
      %s283 = sadd.s32 %s281, %s282
      %s284 = smul.addr %s283, 8
      %s285 = scalar_lea.vmem %s5, %s284
      %v286 = vld [vmem:[%s266] sm:$0xff]
      %v287 = vld [vmem:[%s1] sm:$0xff]
      %v288 = vld [vmem:[%s1 + $0x8] sm:$0xff]
      %v289 = vld [vmem:[%s1 + $0x10] sm:$0xff]
      %v290 = vld [vmem:[%s1 + $0x18] sm:$0xff]
      %v291 = vld [vmem:[%s1 + $0x20] sm:$0xff]
      %v292 = vld [vmem:[%s1 + $0x28] sm:$0xff]
      %v293 = vld [vmem:[%s1 + $0x30] sm:$0xff]
      %v294 = vld [vmem:[%s1 + $0x38] sm:$0xff]
      %v295 = vld [vmem:[%s2] sm:$0xff]
      %v296 = vld [vmem:[%s2 + $0x8] sm:$0xff]
      %v297 = vld [vmem:[%s2 + $0x10] sm:$0xff]
      %v298 = vld [vmem:[%s2 + $0x18] sm:$0xff]
      %v299 = vld [vmem:[%s2 + $0x20] sm:$0xff]
      %v300 = vld [vmem:[%s2 + $0x28] sm:$0xff]
      %v301 = vld [vmem:[%s2 + $0x30] sm:$0xff]
      %v302 = vld [vmem:[%s2 + $0x38] sm:$0xff]
      %304 = vset.pattern.permute.xlu0 0
      %305 = vperm.xlu0 %304, %v295
      %v306 = vpop.permute.xlu0 %305
      %309 = vset.pattern.permute.xlu0 0
      %310 = vperm.xlu0 %309, %v296
      %v311 = vpop.permute.xlu0 %310
      %314 = vset.pattern.permute.xlu0 0
      %315 = vperm.xlu0 %314, %v297
      %v316 = vpop.permute.xlu0 %315
      %319 = vset.pattern.permute.xlu0 0
      %320 = vperm.xlu0 %319, %v298
      %v321 = vpop.permute.xlu0 %320
      %324 = vset.pattern.permute.xlu0 0
      %325 = vperm.xlu0 %324, %v299
      %v326 = vpop.permute.xlu0 %325
      %329 = vset.pattern.permute.xlu0 0
      %330 = vperm.xlu0 %329, %v300
      %v331 = vpop.permute.xlu0 %330
      %334 = vset.pattern.permute.xlu0 0
      %335 = vperm.xlu0 %334, %v301
      %v336 = vpop.permute.xlu0 %335
      %339 = vset.pattern.permute.xlu0 0
      %340 = vperm.xlu0 %339, %v302
      %v341 = vpop.permute.xlu0 %340
      %v344 = vcombine.high %v286, %v286
      %vm345 = vcmask 31744
      %v347 = vsel %vm345, %v287, 0
      %v350 = vsel %vm345, %v288, 0
      %v353 = vsel %vm345, %v289, 0
      %v356 = vsel %vm345, %v290, 0
      %v359 = vsel %vm345, %v291, 0
      %v362 = vsel %vm345, %v292, 0
      %v365 = vsel %vm345, %v293, 0
      %v368 = vsel %vm345, %v294, 0
      %vm370 = vcmask 1043456
      %v371 = vsel %vm370, %v286, 0
      %v373 = vsel %vm370, %v344, 0
      %375 = vmatprep.subr.mxu0 0.0
      %376 = vmatpush1.msra.mxu0 0.0
      %377 = vmatprep.subr.mxu0 0.0
      %378 = vmatpush1.msra.mxu0 0.0
      %379 = vmatprep.subr.mxu0 0.0
      %380 = vmatpush1.msra.mxu0 0.0
      %381 = vmatprep.subr.mxu0 0.0
      %382 = vmatpush1.msra.mxu0 0.0
      %383 = vmatprep.subr.mxu0 0.0
      %384 = vmatpush1.msra.mxu0 0.0
      %385 = vmatprep.subr.mxu0 0.0
      %386 = vmatpush1.msra.mxu0 0.0
      %387 = vmatprep.subr.mxu0 0.0
      %388 = vmatpush1.msra.mxu0 0.0
      %389 = vmatprep.subr.mxu0 0.0
      %390 = vmatpush1.msra.mxu0 0.0
      %391 = vmatprep.subr.mxu0 0.0
      %392 = vmatpush1.msra.mxu0 0.0
      %393 = vmatprep.subr.mxu0 0.0
      %394 = vmatpush1.msra.mxu0 0.0
      %395 = vmatprep.subr.mxu0 0.0
      %396 = vmatpush1.msra.mxu0 0.0
      %397 = vmatprep.subr.mxu0 0.0
      %398 = vmatpush1.msra.mxu0 0.0
      %399 = vmatprep.subr.mxu0 0.0
      %400 = vmatpush1.msra.mxu0 0.0
      %401 = vmatprep.subr.mxu0 0.0
      %402 = vmatpush1.msra.mxu0 0.0
      %403 = vmatprep.subr.mxu0 0.0
      %404 = vmatpush1.msra.mxu0 0.0
      %405 = vmatprep.subr.mxu0 %v373
      %406 = vmatpush1.msra.mxu0 %v371
      %407 = vmatprep.subr.mxu0 0.0
      %408 = vmatpush2.msra.mxu0 0.0
      %409 = vmatprep.subr.mxu0 0.0
      %410 = vmatpush2.msra.mxu0 0.0
      %411 = vmatprep.subr.mxu0 0.0
      %412 = vmatpush2.msra.mxu0 0.0
      %413 = vmatprep.subr.mxu0 0.0
      %414 = vmatpush2.msra.mxu0 0.0
      %415 = vmatprep.subr.mxu0 0.0
      %416 = vmatpush2.msra.mxu0 0.0
      %417 = vmatprep.subr.mxu0 0.0
      %418 = vmatpush2.msra.mxu0 0.0
      %419 = vmatprep.subr.mxu0 0.0
      %420 = vmatpush2.msra.mxu0 0.0
      %421 = vmatprep.subr.mxu0 0.0
      %422 = vmatpush2.msra.mxu0 0.0
      %423 = vmatprep.subr.mxu0 0.0
      %424 = vmatpush2.msra.mxu0 0.0
      %425 = vmatprep.subr.mxu0 0.0
      %426 = vmatpush2.msra.mxu0 0.0
      %427 = vmatprep.subr.mxu0 0.0
      %428 = vmatpush2.msra.mxu0 0.0
      %429 = vmatprep.subr.mxu0 0.0
      %430 = vmatpush2.msra.mxu0 0.0
      %431 = vmatprep.subr.mxu0 0.0
      %432 = vmatpush2.msra.mxu0 0.0
      %433 = vmatprep.subr.mxu0 0.0
      %434 = vmatpush2.msra.mxu0 0.0
      %435 = vmatprep.subr.mxu0 0.0
      %436 = vmatpush2.msra.mxu0 0.0
      %437 = vmatprep.subr.mxu0 0.0
      %438 = vmatpush2.msra.mxu0 0.0
      %439 = vmatprep.mubr.f32.mxu0 0.0
      %440 = vmatmul.mubr.f32.gmra.mxu0 %v347
      %v441 = vpop.f32.mrf.mxu0
      %v442 = vadd.f32 %v306, %v441
      %v443 = vpop.f32.mrf.mxu0
      %v444 = vadd.f32 %v306, %v443
      %445 = vmatprep.mubr.f32.mxu0 0.0
      %446 = vmatmul.mubr.f32.gmra.mxu0 %v350
      %v447 = vpop.f32.mrf.mxu0
      %v448 = vadd.f32 %v311, %v447
      %v449 = vpop.f32.mrf.mxu0
      %v450 = vadd.f32 %v311, %v449
      %451 = vmatprep.mubr.f32.mxu0 0.0
      %452 = vmatmul.mubr.f32.gmra.mxu0 %v353
      %v453 = vpop.f32.mrf.mxu0
      %v454 = vadd.f32 %v316, %v453
      %v455 = vpop.f32.mrf.mxu0
      %v456 = vadd.f32 %v316, %v455
      %457 = vmatprep.mubr.f32.mxu0 0.0
      %458 = vmatmul.mubr.f32.gmra.mxu0 %v356
      %v459 = vpop.f32.mrf.mxu0
      %v460 = vadd.f32 %v321, %v459
      %v461 = vpop.f32.mrf.mxu0
      %v462 = vadd.f32 %v321, %v461
      %463 = vmatprep.mubr.f32.mxu0 0.0
      %464 = vmatmul.mubr.f32.gmra.mxu0 %v359
      %v465 = vpop.f32.mrf.mxu0
      %v466 = vadd.f32 %v326, %v465
      %v467 = vpop.f32.mrf.mxu0
      %v468 = vadd.f32 %v326, %v467
      %469 = vmatprep.mubr.f32.mxu0 0.0
      %470 = vmatmul.mubr.f32.gmra.mxu0 %v362
      %v471 = vpop.f32.mrf.mxu0
      %v472 = vadd.f32 %v331, %v471
      %v473 = vpop.f32.mrf.mxu0
      %v474 = vadd.f32 %v331, %v473
      %475 = vmatprep.mubr.f32.mxu0 0.0
      %476 = vmatmul.mubr.f32.gmra.mxu0 %v365
      %v477 = vpop.f32.mrf.mxu0
      %v478 = vadd.f32 %v336, %v477
      %v479 = vpop.f32.mrf.mxu0
      %v480 = vadd.f32 %v336, %v479
      %481 = vmatprep.mubr.f32.mxu0 0.0
      %482 = vmatmul.mubr.f32.gmra.mxu0 %v368
      %v483 = vpop.f32.mrf.mxu0
      %v484 = vadd.f32 %v341, %v483
      %v485 = vpop.f32.mrf.mxu0
      %v486 = vadd.f32 %v341, %v485
      %487 = vdwg.mxu0
      %vm488 = vcmp.gt.f32.partialorder %v442, 0.0
      %vm489 = vcmp.gt.f32.partialorder %v444, 0.0
      %vm490 = vcmp.gt.f32.partialorder %v448, 0.0
      %vm491 = vcmp.gt.f32.partialorder %v450, 0.0
      %vm492 = vcmp.gt.f32.partialorder %v454, 0.0
      %vm493 = vcmp.gt.f32.partialorder %v456, 0.0
      %vm494 = vcmp.gt.f32.partialorder %v460, 0.0
      %vm495 = vcmp.gt.f32.partialorder %v462, 0.0
      %vm496 = vcmp.gt.f32.partialorder %v466, 0.0
      %vm497 = vcmp.gt.f32.partialorder %v468, 0.0
      %vm498 = vcmp.gt.f32.partialorder %v472, 0.0
      %vm499 = vcmp.gt.f32.partialorder %v474, 0.0
      %vm500 = vcmp.gt.f32.partialorder %v478, 0.0
      %vm501 = vcmp.gt.f32.partialorder %v480, 0.0
      %vm502 = vcmp.gt.f32.partialorder %v484, 0.0
      %vm503 = vcmp.gt.f32.partialorder %v486, 0.0
      %v504 = vmul.f32 %v442, 0.2
      %v505 = vmul.f32 %v444, 0.2
      %v506 = vmul.f32 %v448, 0.2
      %v507 = vmul.f32 %v450, 0.2
      %v508 = vmul.f32 %v454, 0.2
      %v509 = vmul.f32 %v456, 0.2
      %v510 = vmul.f32 %v460, 0.2
      %v511 = vmul.f32 %v462, 0.2
      %v512 = vmul.f32 %v466, 0.2
      %v513 = vmul.f32 %v468, 0.2
      %v514 = vmul.f32 %v472, 0.2
      %v515 = vmul.f32 %v474, 0.2
      %v516 = vmul.f32 %v478, 0.2
      %v517 = vmul.f32 %v480, 0.2
      %v518 = vmul.f32 %v484, 0.2
      %v519 = vmul.f32 %v486, 0.2
      %v520 = vsel %vm488, %v442, %v504
      %v521 = vsel %vm489, %v444, %v505
      %v522 = vsel %vm490, %v448, %v506
      %v523 = vsel %vm491, %v450, %v507
      %v524 = vsel %vm492, %v454, %v508
      %v525 = vsel %vm493, %v456, %v509
      %v526 = vsel %vm494, %v460, %v510
      %v527 = vsel %vm495, %v462, %v511
      %v528 = vsel %vm496, %v466, %v512
      %v529 = vsel %vm497, %v468, %v513
      %v530 = vsel %vm498, %v472, %v514
      %v531 = vsel %vm499, %v474, %v515
      %v532 = vsel %vm500, %v478, %v516
      %v533 = vsel %vm501, %v480, %v517
      %v534 = vsel %vm502, %v484, %v518
      %v535 = vsel %vm503, %v486, %v519
      %v536 = vld [vmem:[%s3] sm:$0xff]
      %v537 = vld [vmem:[%s3 + $0x8] sm:$0xff]
      %v538 = vld [vmem:[%s3 + $0x10] sm:$0xff]
      %v539 = vld [vmem:[%s3 + $0x18] sm:$0xff]
      %v540 = vld [vmem:[%s3 + $0x20] sm:$0xff]
      %v541 = vld [vmem:[%s3 + $0x28] sm:$0xff]
      %v542 = vld [vmem:[%s3 + $0x30] sm:$0xff]
      %v543 = vld [vmem:[%s3 + $0x38] sm:$0xff]
      %v544 = vld [vmem:[%s3 + $0x40] sm:$0xff]
      %v545 = vld [vmem:[%s3 + $0x48] sm:$0xff]
      %v546 = vld [vmem:[%s3 + $0x50] sm:$0xff]
      %v547 = vld [vmem:[%s3 + $0x58] sm:$0xff]
      %v548 = vld [vmem:[%s3 + $0x60] sm:$0xff]
      %v549 = vld [vmem:[%s3 + $0x68] sm:$0xff]
      %v550 = vld [vmem:[%s3 + $0x70] sm:$0xff]
      %v551 = vld [vmem:[%s3 + $0x78] sm:$0xff]
      %vm552 = vcmask 523264
      %v554 = vsel %vm552, %v536, 0
      %v557 = vsel %vm552, %v537, 0
      %v560 = vsel %vm552, %v538, 0
      %v563 = vsel %vm552, %v539, 0
      %v566 = vsel %vm552, %v540, 0
      %v569 = vsel %vm552, %v541, 0
      %v572 = vsel %vm552, %v542, 0
      %v575 = vsel %vm552, %v543, 0
      %v578 = vsel %vm552, %v544, 0
      %v581 = vsel %vm552, %v545, 0
      %v584 = vsel %vm552, %v546, 0
      %v587 = vsel %vm552, %v547, 0
      %v590 = vsel %vm552, %v548, 0
      %v593 = vsel %vm552, %v549, 0
      %v596 = vsel %vm552, %v550, 0
      %v599 = vsel %vm552, %v551, 0
      %601 = vmatprep.subr.mxu0 0.0
      %602 = vmatpush1.msra.mxu0 0.0
      %603 = vmatprep.subr.mxu0 0.0
      %604 = vmatpush1.msra.mxu0 0.0
      %605 = vmatprep.subr.mxu0 0.0
      %606 = vmatpush1.msra.mxu0 0.0
      %607 = vmatprep.subr.mxu0 0.0
      %608 = vmatpush1.msra.mxu0 0.0
      %609 = vmatprep.subr.mxu0 0.0
      %610 = vmatpush1.msra.mxu0 0.0
      %611 = vmatprep.subr.mxu0 0.0
      %612 = vmatpush1.msra.mxu0 0.0
      %613 = vmatprep.subr.mxu0 0.0
      %614 = vmatpush1.msra.mxu0 0.0
      %615 = vmatprep.subr.mxu0 0.0
      %616 = vmatpush1.msra.mxu0 0.0
      %617 = vmatprep.subr.mxu0 %v535
      %618 = vmatpush1.msra.mxu0 %v534
      %619 = vmatprep.subr.mxu0 %v533
      %620 = vmatpush1.msra.mxu0 %v532
      %621 = vmatprep.subr.mxu0 %v531
      %622 = vmatpush1.msra.mxu0 %v530
      %623 = vmatprep.subr.mxu0 %v529
      %624 = vmatpush1.msra.mxu0 %v528
      %625 = vmatprep.subr.mxu0 %v527
      %626 = vmatpush1.msra.mxu0 %v526
      %627 = vmatprep.subr.mxu0 %v525
      %628 = vmatpush1.msra.mxu0 %v524
      %629 = vmatprep.subr.mxu0 %v523
      %630 = vmatpush1.msra.mxu0 %v522
      %631 = vmatprep.subr.mxu0 %v521
      %632 = vmatpush1.msra.mxu0 %v520
      %633 = vmatprep.subr.mxu0 0.0
      %634 = vmatpush2.msra.mxu0 0.0
      %635 = vmatprep.subr.mxu0 0.0
      %636 = vmatpush2.msra.mxu0 0.0
      %637 = vmatprep.subr.mxu0 0.0
      %638 = vmatpush2.msra.mxu0 0.0
      %639 = vmatprep.subr.mxu0 0.0
      %640 = vmatpush2.msra.mxu0 0.0
      %641 = vmatprep.subr.mxu0 0.0
      %642 = vmatpush2.msra.mxu0 0.0
      %643 = vmatprep.subr.mxu0 0.0
      %644 = vmatpush2.msra.mxu0 0.0
      %645 = vmatprep.subr.mxu0 0.0
      %646 = vmatpush2.msra.mxu0 0.0
      %647 = vmatprep.subr.mxu0 0.0
      %648 = vmatpush2.msra.mxu0 0.0
      %649 = vmatprep.subr.mxu0 0.0
      %650 = vmatpush2.msra.mxu0 0.0
      %651 = vmatprep.subr.mxu0 0.0
      %652 = vmatpush2.msra.mxu0 0.0
      %653 = vmatprep.subr.mxu0 0.0
      %654 = vmatpush2.msra.mxu0 0.0
      %655 = vmatprep.subr.mxu0 0.0
      %656 = vmatpush2.msra.mxu0 0.0
      %657 = vmatprep.subr.mxu0 0.0
      %658 = vmatpush2.msra.mxu0 0.0
      %659 = vmatprep.subr.mxu0 0.0
      %660 = vmatpush2.msra.mxu0 0.0
      %661 = vmatprep.subr.mxu0 0.0
      %662 = vmatpush2.msra.mxu0 0.0
      %663 = vmatprep.subr.mxu0 0.0
      %664 = vmatpush2.msra.mxu0 0.0
      %665 = vmatprep.mubr.f32.mxu0 0.0
      %666 = vmatmul.mubr.f32.gmra.mxu0 %v554
      %v667 = vpop.f32.mrf.mxu0
      %v668 = vadd.f32 0.0, %v667
      %v669 = vpop.f32.mrf.mxu0
      %v670 = vadd.f32 0.0, %v669
      %671 = vmatprep.mubr.f32.mxu0 0.0
      %672 = vmatmul.mubr.f32.gmra.mxu0 %v557
      %v673 = vpop.f32.mrf.mxu0
      %v674 = vadd.f32 0.0, %v673
      %v675 = vpop.f32.mrf.mxu0
      %v676 = vadd.f32 0.0, %v675
      %677 = vmatprep.mubr.f32.mxu0 0.0
      %678 = vmatmul.mubr.f32.gmra.mxu0 %v560
      %v679 = vpop.f32.mrf.mxu0
      %v680 = vadd.f32 0.0, %v679
      %v681 = vpop.f32.mrf.mxu0
      %v682 = vadd.f32 0.0, %v681
      %683 = vmatprep.mubr.f32.mxu0 0.0
      %684 = vmatmul.mubr.f32.gmra.mxu0 %v563
      %v685 = vpop.f32.mrf.mxu0
      %v686 = vadd.f32 0.0, %v685
      %v687 = vpop.f32.mrf.mxu0
      %v688 = vadd.f32 0.0, %v687
      %689 = vmatprep.mubr.f32.mxu0 0.0
      %690 = vmatmul.mubr.f32.gmra.mxu0 %v566
      %v691 = vpop.f32.mrf.mxu0
      %v692 = vadd.f32 0.0, %v691
      %v693 = vpop.f32.mrf.mxu0
      %v694 = vadd.f32 0.0, %v693
      %695 = vmatprep.mubr.f32.mxu0 0.0
      %696 = vmatmul.mubr.f32.gmra.mxu0 %v569
      %v697 = vpop.f32.mrf.mxu0
      %v698 = vadd.f32 0.0, %v697
      %v699 = vpop.f32.mrf.mxu0
      %v700 = vadd.f32 0.0, %v699
      %701 = vmatprep.mubr.f32.mxu0 0.0
      %702 = vmatmul.mubr.f32.gmra.mxu0 %v572
      %v703 = vpop.f32.mrf.mxu0
      %v704 = vadd.f32 0.0, %v703
      %v705 = vpop.f32.mrf.mxu0
      %v706 = vadd.f32 0.0, %v705
      %707 = vmatprep.mubr.f32.mxu0 0.0
      %708 = vmatmul.mubr.f32.gmra.mxu0 %v575
      %v709 = vpop.f32.mrf.mxu0
      %v710 = vadd.f32 0.0, %v709
      %v711 = vpop.f32.mrf.mxu0
      %v712 = vadd.f32 0.0, %v711
      %713 = vmatprep.mubr.f32.mxu0 0.0
      %714 = vmatmul.mubr.f32.gmra.mxu0 %v578
      %v715 = vpop.f32.mrf.mxu0
      %v716 = vadd.f32 0.0, %v715
      %v717 = vpop.f32.mrf.mxu0
      %v718 = vadd.f32 0.0, %v717
      %719 = vmatprep.mubr.f32.mxu0 0.0
      %720 = vmatmul.mubr.f32.gmra.mxu0 %v581
      %v721 = vpop.f32.mrf.mxu0
      %v722 = vadd.f32 0.0, %v721
      %v723 = vpop.f32.mrf.mxu0
      %v724 = vadd.f32 0.0, %v723
      %725 = vmatprep.mubr.f32.mxu0 0.0
      %726 = vmatmul.mubr.f32.gmra.mxu0 %v584
      %v727 = vpop.f32.mrf.mxu0
      %v728 = vadd.f32 0.0, %v727
      %v729 = vpop.f32.mrf.mxu0
      %v730 = vadd.f32 0.0, %v729
      %731 = vmatprep.mubr.f32.mxu0 0.0
      %732 = vmatmul.mubr.f32.gmra.mxu0 %v587
      %v733 = vpop.f32.mrf.mxu0
      %v734 = vadd.f32 0.0, %v733
      %v735 = vpop.f32.mrf.mxu0
      %v736 = vadd.f32 0.0, %v735
      %737 = vmatprep.mubr.f32.mxu0 0.0
      %738 = vmatmul.mubr.f32.gmra.mxu0 %v590
      %v739 = vpop.f32.mrf.mxu0
      %v740 = vadd.f32 0.0, %v739
      %v741 = vpop.f32.mrf.mxu0
      %v742 = vadd.f32 0.0, %v741
      %743 = vmatprep.mubr.f32.mxu0 0.0
      %744 = vmatmul.mubr.f32.gmra.mxu0 %v593
      %v745 = vpop.f32.mrf.mxu0
      %v746 = vadd.f32 0.0, %v745
      %v747 = vpop.f32.mrf.mxu0
      %v748 = vadd.f32 0.0, %v747
      %749 = vmatprep.mubr.f32.mxu0 0.0
      %750 = vmatmul.mubr.f32.gmra.mxu0 %v596
      %v751 = vpop.f32.mrf.mxu0
      %v752 = vadd.f32 0.0, %v751
      %v753 = vpop.f32.mrf.mxu0
      %v754 = vadd.f32 0.0, %v753
      %755 = vmatprep.mubr.f32.mxu0 0.0
      %756 = vmatmul.mubr.f32.gmra.mxu0 %v599
      %v757 = vpop.f32.mrf.mxu0
      %v758 = vadd.f32 0.0, %v757
      %v759 = vpop.f32.mrf.mxu0
      %v760 = vadd.f32 0.0, %v759
      %761 = vdwg.mxu0
      %v762 = vadd.f32 %v668, %v670
      %763 = vadd.xlane.f32.xlu0 %v762
      %v764 = vpop.xlane.xlu0 %763
      %v765 = vadd.f32 %v674, %v676
      %766 = vadd.xlane.f32.xlu0 %v765
      %v767 = vpop.xlane.xlu0 %766
      %v768 = vadd.f32 %v680, %v682
      %769 = vadd.xlane.f32.xlu0 %v768
      %v770 = vpop.xlane.xlu0 %769
      %v771 = vadd.f32 %v686, %v688
      %772 = vadd.xlane.f32.xlu0 %v771
      %v773 = vpop.xlane.xlu0 %772
      %v774 = vadd.f32 %v692, %v694
      %775 = vadd.xlane.f32.xlu0 %v774
      %v776 = vpop.xlane.xlu0 %775
      %v777 = vadd.f32 %v698, %v700
      %778 = vadd.xlane.f32.xlu0 %v777
      %v779 = vpop.xlane.xlu0 %778
      %v780 = vadd.f32 %v704, %v706
      %781 = vadd.xlane.f32.xlu0 %v780
      %v782 = vpop.xlane.xlu0 %781
      %v783 = vadd.f32 %v710, %v712
      %784 = vadd.xlane.f32.xlu0 %v783
      %v785 = vpop.xlane.xlu0 %784
      %v786 = vadd.f32 %v716, %v718
      %787 = vadd.xlane.f32.xlu0 %v786
      %v788 = vpop.xlane.xlu0 %787
      %v789 = vadd.f32 %v722, %v724
      %790 = vadd.xlane.f32.xlu0 %v789
      %v791 = vpop.xlane.xlu0 %790
      %v792 = vadd.f32 %v728, %v730
      %793 = vadd.xlane.f32.xlu0 %v792
      %v794 = vpop.xlane.xlu0 %793
      %v795 = vadd.f32 %v734, %v736
      %796 = vadd.xlane.f32.xlu0 %v795
      %v797 = vpop.xlane.xlu0 %796
      %v798 = vadd.f32 %v740, %v742
      %799 = vadd.xlane.f32.xlu0 %v798
      %v800 = vpop.xlane.xlu0 %799
      %v801 = vadd.f32 %v746, %v748
      %802 = vadd.xlane.f32.xlu0 %v801
      %v803 = vpop.xlane.xlu0 %802
      %v804 = vadd.f32 %v752, %v754
      %805 = vadd.xlane.f32.xlu0 %v804
      %v806 = vpop.xlane.xlu0 %805
      %v807 = vadd.f32 %v758, %v760
      %808 = vadd.xlane.f32.xlu0 %v807
      %v809 = vpop.xlane.xlu0 %808
      %vm810 = vcmask 7168
      %811 = vst.msk [vmem:[%s276] sm:$0xff] %vm810, %v764
      %812 = vst.msk [vmem:[%s276 + $0x8] sm:$0xff] %vm810, %v767
      %813 = vst.msk [vmem:[%s276 + $0x10] sm:$0xff] %vm810, %v770
      %814 = vst.msk [vmem:[%s276 + $0x18] sm:$0xff] %vm810, %v773
      %815 = vst.msk [vmem:[%s276 + $0x20] sm:$0xff] %vm810, %v776
      %816 = vst.msk [vmem:[%s276 + $0x28] sm:$0xff] %vm810, %v779
      %817 = vst.msk [vmem:[%s276 + $0x30] sm:$0xff] %vm810, %v782
      %818 = vst.msk [vmem:[%s276 + $0x38] sm:$0xff] %vm810, %v785
      %819 = vst.msk [vmem:[%s276 + $0x40] sm:$0xff] %vm810, %v788
      %820 = vst.msk [vmem:[%s276 + $0x48] sm:$0xff] %vm810, %v791
      %821 = vst.msk [vmem:[%s276 + $0x50] sm:$0xff] %vm810, %v794
      %822 = vst.msk [vmem:[%s276 + $0x58] sm:$0xff] %vm810, %v797
      %823 = vst.msk [vmem:[%s276 + $0x60] sm:$0xff] %vm810, %v800
      %824 = vst.msk [vmem:[%s276 + $0x68] sm:$0xff] %vm810, %v803
      %825 = vst.msk [vmem:[%s276 + $0x70] sm:$0xff] %vm810, %v806
      %826 = vst.msk [vmem:[%s276 + $0x78] sm:$0xff] %vm810, %v809
      %v827 = vmul.f32 %v668, %v668
      %v828 = vmul.f32 %v670, %v670
      %v829 = vmul.f32 %v674, %v674
      %v830 = vmul.f32 %v676, %v676
      %v831 = vmul.f32 %v680, %v680
      %v832 = vmul.f32 %v682, %v682
      %v833 = vmul.f32 %v686, %v686
      %v834 = vmul.f32 %v688, %v688
      %v835 = vmul.f32 %v692, %v692
      %v836 = vmul.f32 %v694, %v694
      %v837 = vmul.f32 %v698, %v698
      %v838 = vmul.f32 %v700, %v700
      %v839 = vmul.f32 %v704, %v704
      %v840 = vmul.f32 %v706, %v706
      %v841 = vmul.f32 %v710, %v710
      %v842 = vmul.f32 %v712, %v712
      %v843 = vmul.f32 %v716, %v716
      %v844 = vmul.f32 %v718, %v718
      %v845 = vmul.f32 %v722, %v722
      %v846 = vmul.f32 %v724, %v724
      %v847 = vmul.f32 %v728, %v728
      %v848 = vmul.f32 %v730, %v730
      %v849 = vmul.f32 %v734, %v734
      %v850 = vmul.f32 %v736, %v736
      %v851 = vmul.f32 %v740, %v740
      %v852 = vmul.f32 %v742, %v742
      %v853 = vmul.f32 %v746, %v746
      %v854 = vmul.f32 %v748, %v748
      %v855 = vmul.f32 %v752, %v752
      %v856 = vmul.f32 %v754, %v754
      %v857 = vmul.f32 %v758, %v758
      %v858 = vmul.f32 %v760, %v760
      %v859 = vadd.f32 %v827, %v828
      %860 = vadd.xlane.f32.xlu0 %v859
      %v861 = vpop.xlane.xlu0 %860
      %v862 = vadd.f32 %v829, %v830
      %863 = vadd.xlane.f32.xlu0 %v862
      %v864 = vpop.xlane.xlu0 %863
      %v865 = vadd.f32 %v831, %v832
      %866 = vadd.xlane.f32.xlu0 %v865
      %v867 = vpop.xlane.xlu0 %866
      %v868 = vadd.f32 %v833, %v834
      %869 = vadd.xlane.f32.xlu0 %v868
      %v870 = vpop.xlane.xlu0 %869
      %v871 = vadd.f32 %v835, %v836
      %872 = vadd.xlane.f32.xlu0 %v871
      %v873 = vpop.xlane.xlu0 %872
      %v874 = vadd.f32 %v837, %v838
      %875 = vadd.xlane.f32.xlu0 %v874
      %v876 = vpop.xlane.xlu0 %875
      %v877 = vadd.f32 %v839, %v840
      %878 = vadd.xlane.f32.xlu0 %v877
      %v879 = vpop.xlane.xlu0 %878
      %v880 = vadd.f32 %v841, %v842
      %881 = vadd.xlane.f32.xlu0 %v880
      %v882 = vpop.xlane.xlu0 %881
      %v883 = vadd.f32 %v843, %v844
      %884 = vadd.xlane.f32.xlu0 %v883
      %v885 = vpop.xlane.xlu0 %884
      %v886 = vadd.f32 %v845, %v846
      %887 = vadd.xlane.f32.xlu0 %v886
      %v888 = vpop.xlane.xlu0 %887
      %v889 = vadd.f32 %v847, %v848
      %890 = vadd.xlane.f32.xlu0 %v889
      %v891 = vpop.xlane.xlu0 %890
      %v892 = vadd.f32 %v849, %v850
      %893 = vadd.xlane.f32.xlu0 %v892
      %v894 = vpop.xlane.xlu0 %893
      %v895 = vadd.f32 %v851, %v852
      %896 = vadd.xlane.f32.xlu0 %v895
      %v897 = vpop.xlane.xlu0 %896
      %v898 = vadd.f32 %v853, %v854
      %899 = vadd.xlane.f32.xlu0 %v898
      %v900 = vpop.xlane.xlu0 %899
      %v901 = vadd.f32 %v855, %v856
      %902 = vadd.xlane.f32.xlu0 %v901
      %v903 = vpop.xlane.xlu0 %902
      %v904 = vadd.f32 %v857, %v858
      %905 = vadd.xlane.f32.xlu0 %v904
      %v906 = vpop.xlane.xlu0 %905
      %907 = vst.msk [vmem:[%s285] sm:$0xff] %vm810, %v861
      %908 = vst.msk [vmem:[%s285 + $0x8] sm:$0xff] %vm810, %v864
      %909 = vst.msk [vmem:[%s285 + $0x10] sm:$0xff] %vm810, %v867
      %910 = vst.msk [vmem:[%s285 + $0x18] sm:$0xff] %vm810, %v870
      %911 = vst.msk [vmem:[%s285 + $0x20] sm:$0xff] %vm810, %v873
      %912 = vst.msk [vmem:[%s285 + $0x28] sm:$0xff] %vm810, %v876
      %913 = vst.msk [vmem:[%s285 + $0x30] sm:$0xff] %vm810, %v879
      %914 = vst.msk [vmem:[%s285 + $0x38] sm:$0xff] %vm810, %v882
      %915 = vst.msk [vmem:[%s285 + $0x40] sm:$0xff] %vm810, %v885
      %916 = vst.msk [vmem:[%s285 + $0x48] sm:$0xff] %vm810, %v888
      %917 = vst.msk [vmem:[%s285 + $0x50] sm:$0xff] %vm810, %v891
      %918 = vst.msk [vmem:[%s285 + $0x58] sm:$0xff] %vm810, %v894
      %919 = vst.msk [vmem:[%s285 + $0x60] sm:$0xff] %vm810, %v897
      %920 = vst.msk [vmem:[%s285 + $0x68] sm:$0xff] %vm810, %v900
      %921 = vst.msk [vmem:[%s285 + $0x70] sm:$0xff] %vm810, %v903
      %922 = vst.msk [vmem:[%s285 + $0x78] sm:$0xff] %vm810, %v906
      %p923 = scmp.lt.s32.totalorder %s21, 1
      %s924 = scalar_select %p923, %s21, 1
      %p925 = scmp.lt.s32.totalorder %s22, 0
      %s926 = scalar_select %p925, %s22, 0
      %s927 = smul.addr %s926, 16
      %s928 = smul.addr %s924, 16
      %s929 = sadd.s32 %s927, %s928
      %s930 = smul.addr %s929, 8
      %s931 = scalar_lea.vmem %s4, %s930
      %p932 = scmp.lt.s32.totalorder %s21, 1
      %s933 = scalar_select %p932, %s21, 1
      %p934 = scmp.lt.s32.totalorder %s22, 0
      %s935 = scalar_select %p934, %s22, 0
      %s936 = smul.addr %s935, 16
      %s937 = smul.addr %s933, 16
      %s938 = sadd.s32 %s936, %s937
      %s939 = smul.addr %s938, 8
      %s940 = scalar_lea.vmem %s5, %s939
      // Predicated region
      $region37: #{tpu_custom_call.1} parent=35 // pred_check
        %p941 = pneg %p140
      $region38: #{tpu_custom_call.1} parent=35 // pred_check_branch
        %943 = sbr.rel (%p941) target = $region40
      $region39: #{tpu_custom_call.1} parent=35 // pred_region
        _
      $region40: #{tpu_custom_call.1} parent=35 // pred_fallthru
        _
      // Predicated region
      $region41: #{tpu_custom_call.1} parent=35 // pred_check
        %p944 = pneg %p168
      $region42: #{tpu_custom_call.1} parent=35 // pred_check_branch
        %946 = sbr.rel (%p944) target = $region44
      $region43: #{tpu_custom_call.1} parent=35 // pred_region
        _
      $region44: #{tpu_custom_call.1} parent=35 // pred_fallthru
        _
    $region36: #{tpu_custom_call.1} parent=5 // pred_fallthru
      _
    %p947 = scmp.le.s32.totalorder 2, %s12
    // Predicated region
    $region45: #{tpu_custom_call.1} parent=5 // pred_check
      %p948 = pneg %p947
    $region46: #{tpu_custom_call.1} parent=5 // pred_check_branch
      %950 = sbr.rel (%p948) target = $region48
    $region47: #{tpu_custom_call.1} parent=5 // pred_region
      %s951 = ssub.s32 %s12, 2
      // Predicated region
      $region49: #{tpu_custom_call.1} parent=47 // pred_check
        %p952 = pneg %p146
      $region50: #{tpu_custom_call.1} parent=47 // pred_check_branch
        %954 = sbr.rel (%p952) target = $region52
      $region51: #{tpu_custom_call.1} parent=47 // pred_region
        %p955 = scmp.lt.s32.totalorder %s23, 1
        %s956 = scalar_select %p955, %s23, 1
        %p957 = scmp.lt.s32.totalorder %s24, 0
        %s958 = scalar_select %p957, %s24, 0
        %s959 = smul.addr %s958, 16
        %s960 = smul.addr %s956, 16
        %s961 = sadd.s32 %s959, %s960
        %s962 = smul.addr %s961, 8
        %s963 = scalar_lea.vmem %s4, %s962
      $region52: #{tpu_custom_call.1} parent=47 // pred_fallthru
        _
      // Predicated region
      $region53: #{tpu_custom_call.1} parent=47 // pred_check
        %p964 = pneg %p174
      $region54: #{tpu_custom_call.1} parent=47 // pred_check_branch
        %966 = sbr.rel (%p964) target = $region56
      $region55: #{tpu_custom_call.1} parent=47 // pred_region
        %p967 = scmp.lt.s32.totalorder %s23, 1
        %s968 = scalar_select %p967, %s23, 1
        %p969 = scmp.lt.s32.totalorder %s24, 0
        %s970 = scalar_select %p969, %s24, 0
        %s971 = smul.addr %s970, 16
        %s972 = smul.addr %s968, 16
        %s973 = sadd.s32 %s971, %s972
        %s974 = smul.addr %s973, 8
        %s975 = scalar_lea.vmem %s5, %s974
      $region56: #{tpu_custom_call.1} parent=47 // pred_fallthru
        _
    $region48: #{tpu_custom_call.1} parent=5 // pred_fallthru
      _
  $region6: #{tpu_custom_call.1} parent=0 // loop_footer
    %s16 = sadd.s32 1, %s12
  $region7: #{tpu_custom_call.1} parent=0 // loop_footer_branch
    %11 = sbr.rel target = $region3
  $region8: #{tpu_custom_call.1} parent=0 // loop_exit
    _

</llo_original>
